<compile_context>
chip_gen: v7x
topology: tpu7x:2x2x1
jax: 0.10.0
libtpu: 0.0.40
codegen_flags: <defaults>
</compile_context>

<pallas_src>
import functools

import jax
import jax.numpy as jnp
from jax.experimental import pallas as pl
from jax.experimental.pallas import tpu as pltpu

EPS = 1e-4
_LANE = 128
_TARGET_BLOCK_BYTES = 2 << 20   # ~2 MiB of HBM traffic per input per grid step
_MAX_TILE_LANES = 65536         # hard cap on the lane tile
_NUM_CORE_SPLITS = 2            # leading "parallel" axis (v7x dual TensorCore)


def _round_up(x, m):
    return (x + m - 1) // m * m


def _rgb_sum_kernel(x1_ref, x2_ref, o1_ref, o2_ref, *, hw, tile, tiles_per_core):
    """Accumulate per-(batch, channel) spatial sums of x1 and x2.

    x1_ref/x2_ref: (3B, tile) input tiles (any float dtype).
    o1_ref/o2_ref: (1, 3B, 128) f32 lane-wide partial-sum blocks
                   (one block per parallel core split, resident across k).
    """
    k = pl.program_id(1)

    @pl.when(k == 0)
    def _init():
        o1_ref[...] = jnp.zeros_like(o1_ref)
        o2_ref[...] = jnp.zeros_like(o2_ref)

    # Global spatial block handled by this step and its number of valid lanes.
    g = pl.program_id(0) * tiles_per_core + k
    valid = hw - g * tile          # <= 0 for fully out-of-range (clamped) blocks

    lane_iota = jax.lax.broadcasted_iota(jnp.int32, (1, _LANE), 1)
    n_chunks = tile // _LANE

    def body(c, carry):
        a1, a2 = carry
        off = pl.multiple_of(c * _LANE, _LANE)
        m = (lane_iota + off) < valid
        c1 = jnp.where(m, x1_ref[:, pl.ds(off, _LANE)].astype(jnp.float32), 0.0)
        c2 = jnp.where(m, x2_ref[:, pl.ds(off, _LANE)].astype(jnp.float32), 0.0)
        return a1 + c1, a2 + c2

    a1, a2 = jax.lax.fori_loop(0, n_chunks, body, (o1_ref[0], o2_ref[0]),
                               unroll=min(8, n_chunks))
    o1_ref[0] = a1
    o2_ref[0] = a2


def rgb_loss(x1, x2):
    """x1, x2: (B, 3, H, W), any float dtype -> scalar f32 loss."""
    B, C, H, W = x1.shape
    assert x2.shape == x1.shape and C == 3
    hw = H * W
    rows = B * C

    xf1 = x1.reshape(rows, hw)   # free contiguous reshape; no dtype cast, no pad
    xf2 = x2.reshape(rows, hw)

    itemsize = jnp.dtype(x1.dtype).itemsize
    sublane = max(8, 32 // itemsize)          # 8 for f32, 16 for bf16, 32 for 8-bit
    rows_pad = _round_up(rows, sublane)

    # Lane tile: ~_TARGET_BLOCK_BYTES per input per grid step, multiple of 128,
    # capped, and never wider than the (128-rounded) row itself.
    tile = _round_up(max(_TARGET_BLOCK_BYTES // (rows_pad * itemsize), _LANE), _LANE)
    tile = min(tile, _MAX_TILE_LANES, _round_up(hw, _LANE))

    n_blocks = pl.cdiv(hw, tile)                          # valid spatial blocks
    tiles_per_core = pl.cdiv(n_blocks, _NUM_CORE_SPLITS)

    def in_map(p, k):
        g = p * tiles_per_core + k
        # Clamp so no DMA starts past the array end; the clamped (duplicate)
        # block is fully masked out inside the kernel.
        return (0, jnp.minimum(g, n_blocks - 1))

    out_struct = jax.ShapeDtypeStruct((_NUM_CORE_SPLITS, rows, _LANE), jnp.float32)

    # VMEM budget: 2 inputs x 2 pipeline buffers x (sublane-padded) block, plus
    # the tiny output blocks and headroom.  Stays well under the 32 MiB scoped
    # default (and v7x's 64 MiB physical).
    in_block_bytes = rows_pad * tile * itemsize
    out_block_bytes = _round_up(rows, 8) * _LANE * 4
    vmem_need = 2 * 2 * in_block_bytes + 2 * 2 * out_block_bytes + (1 << 20)
    vmem_limit = int(min(max(2 * vmem_need, 16 << 20), 32 << 20))

    kernel = functools.partial(_rgb_sum_kernel, hw=hw, tile=tile,
                               tiles_per_core=tiles_per_core)

    sums1, sums2 = pl.pallas_call(
        kernel,
        out_shape=(out_struct, out_struct),
        grid=(_NUM_CORE_SPLITS, tiles_per_core),
        in_specs=[
            pl.BlockSpec((rows, tile), in_map),
            pl.BlockSpec((rows, tile), in_map),
        ],
        out_specs=(
            pl.BlockSpec((1, rows, _LANE), lambda p, k: (p, 0, 0)),
            pl.BlockSpec((1, rows, _LANE), lambda p, k: (p, 0, 0)),
        ),
        compiler_params=pltpu.CompilerParams(
            dimension_semantics=("parallel", "arbitrary"),
            vmem_limit_bytes=vmem_limit,
        ),
        cost_estimate=pl.CostEstimate(
            flops=4 * rows * hw,
            transcendentals=0,
            bytes_accessed=2 * rows * hw * itemsize
                           + 2 * _NUM_CORE_SPLITS * rows * _LANE * 4,
        ),
    )(xf1, xf2)

    # Tiny nonlinear epilogue on the per-core lane-wide partial sums (O(B)).
    inv_hw = jnp.float32(1.0 / hw)
    m1 = (jnp.sum(sums1, axis=(0, 2)) * inv_hw).reshape(B, 3)
    m2 = (jnp.sum(sums2, axis=(0, 2)) * inv_hw).reshape(B, 3)

    def k_of(m):
        drg = (m[:, 0] - m[:, 1]) ** 2
        dgb = (m[:, 1] - m[:, 2]) ** 2
        dbr = (m[:, 2] - m[:, 0]) ** 2
        return jnp.sqrt(drg * drg + dgb * dgb + dbr * dbr + EPS)

    return jnp.mean(jnp.abs(k_of(m1) - k_of(m2)))


def _rgb_loss_ref(x1, x2):
    # Pure-JAX reference matching the PyTorch module.
    rgb1 = jnp.mean(x1.astype(jnp.float32), axis=(2, 3), keepdims=True)
    rgb2 = jnp.mean(x2.astype(jnp.float32), axis=(2, 3), keepdims=True)

    def k_of(rgb):
        d01 = (rgb[:, 0] - rgb[:, 1]) ** 2
        d12 = (rgb[:, 1] - rgb[:, 2]) ** 2
        d20 = (rgb[:, 2] - rgb[:, 0]) ** 2
        return jnp.sqrt(d01 ** 2 + d12 ** 2 + d20 ** 2 + EPS).squeeze()

    return jnp.mean(jnp.abs(k_of(rgb1) - k_of(rgb2)))


if __name__ == "__main__":
    key = jax.random.PRNGKey(0)
    k1, k2 = jax.random.split(key)
    B, C, H, W = 2, 3, 16, 16
    x1 = jax.random.uniform(k1, (B, C, H, W), dtype=jnp.float32)
    x2 = jax.random.uniform(k2, (B, C, H, W), dtype=jnp.float32)

    loss = rgb_loss(x1, x2)
    jax.block_until_ready(loss)

    ref = _rgb_loss_ref(x1, x2)
    assert jnp.allclose(loss, ref, atol=1e-6, rtol=1e-5), (loss, ref)

    print("KERNEL_OK")
</pallas_src>

<mosaic_0001>
module attributes {stable_mosaic.version = 11 : i64} {
  func.func @_rgb_sum_kernel(%arg0: i32, %arg1: i32, %arg2: memref<6x256xf32, #tpu.memory_space<vmem>>, %arg3: memref<6x256xf32, #tpu.memory_space<vmem>>, %arg4: memref<1x6x128xf32, #tpu.memory_space<vmem>>, %arg5: memref<1x6x128xf32, #tpu.memory_space<vmem>>) attributes {dimension_semantics = [#tpu.dimension_semantics<parallel>, #tpu.dimension_semantics<arbitrary>], iteration_bounds = array<i64: 2, 1>, scalar_prefetch = 0 : i64, scratch_operands = 0 : i64, tpu.core_type = #tpu.core_type<tc>, window_params = [{transform_indices = @transform_0, window_bounds = array<i64: 6, 256>}, {transform_indices = @transform_1, window_bounds = array<i64: 6, 256>}, {transform_indices = @transform_2, window_bounds = array<i64: 1, 6, 128>}, {transform_indices = @transform_3, window_bounds = array<i64: 1, 6, 128>}]} {
    %c0_i32 = arith.constant 0 : i32
    %0 = arith.cmpi eq, %arg1, %c0_i32 : i32
    %1 = arith.extui %0 : i1 to i32
    %c0_i32_0 = arith.constant 0 : i32
    %2 = arith.cmpi ne, %1, %c0_i32_0 : i32
    scf.if %2 {
      %cst_23 = arith.constant 0.000000e+00 : f32
      %58 = vector.broadcast %cst_23 : f32 to vector<1x6x128xf32>
      %c0_24 = arith.constant 0 : index
      %c0_25 = arith.constant 0 : index
      %c0_26 = arith.constant 0 : index
      %59 = vector.load %arg4[%c0_24, %c0_25, %c0_26] : memref<1x6x128xf32, #tpu.memory_space<vmem>>, vector<1x6x128xf32>
      tpu.vector_store %arg4[%c0_24, %c0_25, %c0_26], %58 {strides = array<i32>} : memref<1x6x128xf32, #tpu.memory_space<vmem>>, vector<1x6x128xf32>,
      %cst_27 = arith.constant 0.000000e+00 : f32
      %60 = vector.broadcast %cst_27 : f32 to vector<1x6x128xf32>
      %c0_28 = arith.constant 0 : index
      %c0_29 = arith.constant 0 : index
      %c0_30 = arith.constant 0 : index
      %61 = vector.load %arg5[%c0_28, %c0_29, %c0_30] : memref<1x6x128xf32, #tpu.memory_space<vmem>>, vector<1x6x128xf32>
      tpu.vector_store %arg5[%c0_28, %c0_29, %c0_30], %60 {strides = array<i32>} : memref<1x6x128xf32, #tpu.memory_space<vmem>>, vector<1x6x128xf32>,
    } else {
    }
    %c1_i32 = arith.constant 1 : i32
    %3 = arith.muli %arg0, %c1_i32 : i32
    %4 = arith.addi %3, %arg1 : i32
    %c256_i32 = arith.constant 256 : i32
    %5 = arith.muli %4, %c256_i32 : i32
    %c256_i32_1 = arith.constant 256 : i32
    %6 = arith.subi %c256_i32_1, %5 : i32
    %7 = tpu.iota {dimensions = array<i32: 1>} : vector<1x128xi32>
    %c0 = arith.constant 0 : index
    %c0_2 = arith.constant 0 : index
    %c0_3 = arith.constant 0 : index
    %8 = vector.load %arg4[%c0, %c0_2, %c0_3] : memref<1x6x128xf32, #tpu.memory_space<vmem>>, vector<1x6x128xf32>
    %9 = vector.shape_cast %8 : vector<1x6x128xf32> to vector<6x128xf32>
    %c0_4 = arith.constant 0 : index
    %c0_5 = arith.constant 0 : index
    %c0_6 = arith.constant 0 : index
    %10 = vector.load %arg5[%c0_4, %c0_5, %c0_6] : memref<1x6x128xf32, #tpu.memory_space<vmem>>, vector<1x6x128xf32>
    %11 = vector.shape_cast %10 : vector<1x6x128xf32> to vector<6x128xf32>
    %c0_i32_7 = arith.constant 0 : i32
    %c128_i32 = arith.constant 128 : i32
    %12 = arith.muli %c0_i32_7, %c128_i32 : i32
    %13 = tpu.assume_multiple %12, 128 : i32
    %14 = vector.broadcast %13 : i32 to vector<1x128xi32>
    %15 = arith.addi %7, %14 : vector<1x128xi32>
    %16 = vector.broadcast %6 : i32 to vector<1x128xi32>
    %17 = arith.cmpi slt, %15, %16 : vector<1x128xi32>
    %c0_8 = arith.constant 0 : index
    %18 = arith.index_cast %13 : i32 to index
    %19 = vector.load %arg2[%c0_8, %18] : memref<6x256xf32, #tpu.memory_space<vmem>>, vector<6x128xf32>
    %cst = arith.constant 0.000000e+00 : f32
    %20 = vector.shape_cast %17 : vector<1x128xi1> to vector<1x128xi1>
    %21 = vector.broadcast %20 : vector<1x128xi1> to vector<6x128xi1>
    %22 = vector.broadcast %cst : f32 to vector<6x128xf32>
    %23 = arith.select %21, %19, %22 : vector<6x128xi1>, vector<6x128xf32>
    %c0_9 = arith.constant 0 : index
    %24 = arith.index_cast %13 : i32 to index
    %25 = vector.load %arg3[%c0_9, %24] : memref<6x256xf32, #tpu.memory_space<vmem>>, vector<6x128xf32>
    %cst_10 = arith.constant 0.000000e+00 : f32
    %26 = vector.shape_cast %17 : vector<1x128xi1> to vector<1x128xi1>
    %27 = vector.broadcast %26 : vector<1x128xi1> to vector<6x128xi1>
    %28 = vector.broadcast %cst_10 : f32 to vector<6x128xf32>
    %29 = arith.select %27, %25, %28 : vector<6x128xi1>, vector<6x128xf32>
    %30 = arith.addf %9, %23 : vector<6x128xf32>
    %31 = arith.addf %11, %29 : vector<6x128xf32>
    %c1_i32_11 = arith.constant 1 : i32
    %c128_i32_12 = arith.constant 128 : i32
    %32 = arith.muli %c1_i32_11, %c128_i32_12 : i32
    %33 = tpu.assume_multiple %32, 128 : i32
    %34 = vector.broadcast %33 : i32 to vector<1x128xi32>
    %35 = arith.addi %7, %34 : vector<1x128xi32>
    %36 = vector.broadcast %6 : i32 to vector<1x128xi32>
    %37 = arith.cmpi slt, %35, %36 : vector<1x128xi32>
    %c0_13 = arith.constant 0 : index
    %38 = arith.index_cast %33 : i32 to index
    %39 = vector.load %arg2[%c0_13, %38] : memref<6x256xf32, #tpu.memory_space<vmem>>, vector<6x128xf32>
    %cst_14 = arith.constant 0.000000e+00 : f32
    %40 = vector.shape_cast %37 : vector<1x128xi1> to vector<1x128xi1>
    %41 = vector.broadcast %40 : vector<1x128xi1> to vector<6x128xi1>
    %42 = vector.broadcast %cst_14 : f32 to vector<6x128xf32>
    %43 = arith.select %41, %39, %42 : vector<6x128xi1>, vector<6x128xf32>
    %c0_15 = arith.constant 0 : index
    %44 = arith.index_cast %33 : i32 to index
    %45 = vector.load %arg3[%c0_15, %44] : memref<6x256xf32, #tpu.memory_space<vmem>>, vector<6x128xf32>
    %cst_16 = arith.constant 0.000000e+00 : f32
    %46 = vector.shape_cast %37 : vector<1x128xi1> to vector<1x128xi1>
    %47 = vector.broadcast %46 : vector<1x128xi1> to vector<6x128xi1>
    %48 = vector.broadcast %cst_16 : f32 to vector<6x128xf32>
    %49 = arith.select %47, %45, %48 : vector<6x128xi1>, vector<6x128xf32>
    %50 = arith.addf %30, %43 : vector<6x128xf32>
    %51 = arith.addf %31, %49 : vector<6x128xf32>
    %c2_i32 = arith.constant 2 : i32
    %c0_17 = arith.constant 0 : index
    %c0_18 = arith.constant 0 : index
    %c0_19 = arith.constant 0 : index
    %52 = vector.load %arg4[%c0_17, %c0_18, %c0_19] : memref<1x6x128xf32, #tpu.memory_space<vmem>>, vector<1x6x128xf32>
    %53 = vector.shape_cast %52 : vector<1x6x128xf32> to vector<6x128xf32>
    %54 = vector.shape_cast %50 : vector<6x128xf32> to vector<1x6x128xf32>
    tpu.vector_store %arg4[%c0_17, %c0_18, %c0_19], %54 {strides = array<i32>} : memref<1x6x128xf32, #tpu.memory_space<vmem>>, vector<1x6x128xf32>,
    %c0_20 = arith.constant 0 : index
    %c0_21 = arith.constant 0 : index
    %c0_22 = arith.constant 0 : index
    %55 = vector.load %arg5[%c0_20, %c0_21, %c0_22] : memref<1x6x128xf32, #tpu.memory_space<vmem>>, vector<1x6x128xf32>
    %56 = vector.shape_cast %55 : vector<1x6x128xf32> to vector<6x128xf32>
    %57 = vector.shape_cast %51 : vector<6x128xf32> to vector<1x6x128xf32>
    tpu.vector_store %arg5[%c0_20, %c0_21, %c0_22], %57 {strides = array<i32>} : memref<1x6x128xf32, #tpu.memory_space<vmem>>, vector<1x6x128xf32>,
    return
  }
  func.func @transform_0(%arg0: i32, %arg1: i32) -> (i32, i32) {
    %c1_i32 = arith.constant 1 : i32
    %0 = arith.muli %arg0, %c1_i32 : i32
    %1 = arith.addi %0, %arg1 : i32
    %c0_i32 = arith.constant 0 : i32
    %2 = arith.minsi %1, %c0_i32 : i32
    %c0_i32_0 = arith.constant 0 : i32
    %c0_i32_1 = arith.constant 0 : i32
    return %c0_i32_0, %2 : i32, i32
  }
  func.func @transform_1(%arg0: i32, %arg1: i32) -> (i32, i32) {
    %c1_i32 = arith.constant 1 : i32
    %0 = arith.muli %arg0, %c1_i32 : i32
    %1 = arith.addi %0, %arg1 : i32
    %c0_i32 = arith.constant 0 : i32
    %2 = arith.minsi %1, %c0_i32 : i32
    %c0_i32_0 = arith.constant 0 : i32
    %c0_i32_1 = arith.constant 0 : i32
    return %c0_i32_0, %2 : i32, i32
  }
  func.func @transform_2(%arg0: i32, %arg1: i32) -> (i32, i32, i32) {
    %c0_i32 = arith.constant 0 : i32
    %c0_i32_0 = arith.constant 0 : i32
    %c0_i32_1 = arith.constant 0 : i32
    return %arg0, %c0_i32, %c0_i32_0 : i32, i32, i32
  }
  func.func @transform_3(%arg0: i32, %arg1: i32) -> (i32, i32, i32) {
    %c0_i32 = arith.constant 0 : i32
    %c0_i32_0 = arith.constant 0 : i32
    %c0_i32_1 = arith.constant 0 : i32
    return %arg0, %c0_i32, %c0_i32_0 : i32, i32, i32
  }
}

</mosaic_0001>

<llo_original>
// kernel: tpu_custom_call.1
$region0: #{tpu_custom_call.1}
  #allocation0 [shape = 'u32[]', space=smem, size = 0x4, offset = 0x4, fixed_abs, tag = 'smem constant byte address 0x4 - core index']
  #allocation1 [shape = 'u32[144,128]{1,0:T(1,128)}', space=vmem, size = 0x12000, scoped, tag = 'internal scratch']
  %s0 = inlined_call_operand.hbm [shape: f32[6,256], index: 0, kind: input, shape index: {}]
  %s1 = inlined_call_operand.hbm [shape: f32[6,256], index: 1, kind: input, shape index: {}]
  %s2 = inlined_call_operand.vmem [shape: f32[2,6,128], index: 2, kind: output, shape index: {0}]
  %s3 = inlined_call_operand.vmem [shape: f32[2,6,128], index: 3, kind: output, shape index: {1}]
  %4 = xla_tuple %s2, %s3
  %s5 = sld [smem:[#allocation0]]
  $region61: #{tpu_custom_call.1} parent=0
    _
  %s7 = ssub.s32 1, %s5
  %s8 = scalar_select 0, %s7, %s5
  $region1: #{tpu_custom_call.1} parent=0
    #allocation2 [shape = 'u8[16384]{0}', space=vmem, size = 0x4000, scoped, tag = 'input window, operand 0']
    #allocation3 [shape = 's32[2]{0}', space=sflag, size = 0x8, scoped, tag = 'scoped memory for tpu_custom_call.1']
    #allocation4 [shape = 'u8[16384]{0}', space=vmem, size = 0x4000, scoped, tag = 'input window, operand 1']
    #allocation5 [shape = 's32[2]{0}', space=sflag, size = 0x8, scoped, tag = 'scoped memory for tpu_custom_call.1']
    %9 = vsyncpa [#allocation3], 0
    %s10 = scalar_lea.sflag [#allocation3], 1
    %11 = vsyncpa %s10, 0
    %12 = vsyncpa [#allocation5], 0
    %s13 = scalar_lea.sflag [#allocation5], 1
    %14 = vsyncpa %s13, 0
    loop: start=0, step=1, limit=4
    $region2: #{tpu_custom_call.1} parent=1 // loop_pre_header
      _
    $region3: #{tpu_custom_call.1} parent=1 // loop_header
      %s16 = sphi 0, %s20
      %p17 = scmp.ge.s32.totalorder %s16, 4
      %s23 = sphi 0, %s35
      %s24 = sphi 0, %s31
      %s25 = sphi 0, %s23
      %s26 = sphi 0, %s24
      %s27 = sphi 0, %s25
      %s28 = sphi 0, %s26
      %s44 = sphi 0, %s46
      %s47 = sphi 0, %s44
      %s48 = sphi 0, %s47
      %s64 = sphi 0, %s48
      %s76 = sphi 0, %s78
      %s79 = sphi 0, %s76
      %s80 = sphi 0, %s79
      %s96 = sphi 0, %s80
      %s102 = sphi 0, %s104
      %s105 = sphi 0, %s102
      %s106 = sphi 0, %s105
      %s122 = sphi 0, %s106
      %s128 = sphi 0, %s130
      %s131 = sphi 0, %s128
      %s132 = sphi 0, %s131
      %s148 = sphi 0, %s132
    $region4: #{tpu_custom_call.1} parent=1 // loop_header_branch
      %19 = sbr.rel (%p17) target = $region8
    $region5: #{tpu_custom_call.1} parent=1 // loop_body
      %s21 = ssub.s32 %s16, 1
      %s22 = ssub.s32 %s16, 2
      %s29 = sadd.s32 1, %s24
      %p30 = scmp.ge.s32.totalorder %s29, 1
      %s31 = scalar_select %p30, 0, %s29
      %s32 = sadd.s32 1, %s23
      %s33 = scalar_select %p30, %s32, %s23
      %p34 = scmp.ge.s32.totalorder %s33, 2
      %s35 = scalar_select %p34, 0, %s33
      %s36 = sadd.s32 %s23, %s24
      %p37 = scmp.lt.s32.totalorder %s36, 0
      %s38 = scalar_select %p37, %s36, 0
      %s39 = sadd.s32 %s35, %s31
      %p40 = scmp.lt.s32.totalorder %s39, 0
      %s41 = scalar_select %p40, %s39, 0
      %s42 = ssub.s32 %s38, %s41
      %p43 = scmp.eq.s32.totalorder %s42, 0
      %s45 = sadd.s32 %s44, 1
      %s46 = scalar_select %p43, %s44, %s45
      %p49 = pneg %p43
      %p50 = scmp.eq.s32.totalorder %s16, 1
      %p51 = por %p49, %p50
      %p52 = scmp.ne.s32.totalorder %s44, %s47
      %p53 = scmp.eq.s32.totalorder %s16, 0
      %p54 = por %p52, %p53
      %p55 = scmp.ne.s32.totalorder %s44, %s47
      %p56 = scmp.eq.s32.totalorder %s21, 1
      %p57 = por %p55, %p56
      %p58 = scmp.ne.s32.totalorder %s47, %s48
      %p59 = scmp.eq.s32.totalorder %s21, 0
      %p60 = por %p58, %p59
      %p61 = scmp.ne.s32.totalorder %s47, %s48
      %p62 = scmp.eq.s32.totalorder %s22, 1
      %p63 = por %p61, %p62
      %p65 = scmp.ne.s32.totalorder %s48, %s64
      %p66 = scmp.eq.s32.totalorder %s22, 0
      %p67 = por %p65, %p66
      %s68 = sadd.s32 %s23, %s24
      %p69 = scmp.lt.s32.totalorder %s68, 0
      %s70 = scalar_select %p69, %s68, 0
      %s71 = sadd.s32 %s35, %s31
      %p72 = scmp.lt.s32.totalorder %s71, 0
      %s73 = scalar_select %p72, %s71, 0
      %s74 = ssub.s32 %s70, %s73
      %p75 = scmp.eq.s32.totalorder %s74, 0
      %s77 = sadd.s32 %s76, 1
      %s78 = scalar_select %p75, %s76, %s77
      %p81 = pneg %p75
      %p82 = scmp.eq.s32.totalorder %s16, 1
      %p83 = por %p81, %p82
      %p84 = scmp.ne.s32.totalorder %s76, %s79
      %p85 = scmp.eq.s32.totalorder %s16, 0
      %p86 = por %p84, %p85
      %p87 = scmp.ne.s32.totalorder %s76, %s79
      %p88 = scmp.eq.s32.totalorder %s21, 1
      %p89 = por %p87, %p88
      %p90 = scmp.ne.s32.totalorder %s79, %s80
      %p91 = scmp.eq.s32.totalorder %s21, 0
      %p92 = por %p90, %p91
      %p93 = scmp.ne.s32.totalorder %s79, %s80
      %p94 = scmp.eq.s32.totalorder %s22, 1
      %p95 = por %p93, %p94
      %p97 = scmp.ne.s32.totalorder %s80, %s96
      %p98 = scmp.eq.s32.totalorder %s22, 0
      %p99 = por %p97, %p98
      %s100 = ssub.s32 %s23, %s35
      %p101 = scmp.eq.s32.totalorder %s100, 0
      %s103 = sadd.s32 %s102, 1
      %s104 = scalar_select %p101, %s102, %s103
      %p107 = pneg %p101
      %p108 = scmp.eq.s32.totalorder %s16, 1
      %p109 = por %p107, %p108
      %p110 = scmp.ne.s32.totalorder %s102, %s105
      %p111 = scmp.eq.s32.totalorder %s16, 0
      %p112 = por %p110, %p111
      %p113 = scmp.ne.s32.totalorder %s102, %s105
      %p114 = scmp.eq.s32.totalorder %s21, 1
      %p115 = por %p113, %p114
      %p116 = scmp.ne.s32.totalorder %s105, %s106
      %p117 = scmp.eq.s32.totalorder %s21, 0
      %p118 = por %p116, %p117
      %p119 = scmp.ne.s32.totalorder %s105, %s106
      %p120 = scmp.eq.s32.totalorder %s22, 1
      %p121 = por %p119, %p120
      %p123 = scmp.ne.s32.totalorder %s106, %s122
      %p124 = scmp.eq.s32.totalorder %s22, 0
      %p125 = por %p123, %p124
      %s126 = ssub.s32 %s23, %s35
      %p127 = scmp.eq.s32.totalorder %s126, 0
      %s129 = sadd.s32 %s128, 1
      %s130 = scalar_select %p127, %s128, %s129
      %p133 = pneg %p127
      %p134 = scmp.eq.s32.totalorder %s16, 1
      %p135 = por %p133, %p134
      %p136 = scmp.ne.s32.totalorder %s128, %s131
      %p137 = scmp.eq.s32.totalorder %s16, 0
      %p138 = por %p136, %p137
      %p139 = scmp.ne.s32.totalorder %s128, %s131
      %p140 = scmp.eq.s32.totalorder %s21, 1
      %p141 = por %p139, %p140
      %p142 = scmp.ne.s32.totalorder %s131, %s132
      %p143 = scmp.eq.s32.totalorder %s21, 0
      %p144 = por %p142, %p143
      %p145 = scmp.ne.s32.totalorder %s131, %s132
      %p146 = scmp.eq.s32.totalorder %s22, 1
      %p147 = por %p145, %p146
      %p149 = scmp.ne.s32.totalorder %s132, %s148
      %p150 = scmp.eq.s32.totalorder %s22, 0
      %p151 = por %p149, %p150
      %p152 = scmp.le.s32.totalorder 1, %s16
      %p153 = scmp.lt.s32.totalorder %s16, 3
      %p154 = pnand %p152, %p153
      %p155 = pneg %p154
      // Predicated region
      $region9: #{tpu_custom_call.1} parent=5 // pred_check
        _
      $region10: #{tpu_custom_call.1} parent=5 // pred_check_branch
        %157 = sbr.rel (%p154) target = $region12
      $region11: #{tpu_custom_call.1} parent=5 // pred_region
        %s158 = ssub.s32 %s16, 1
      $region12: #{tpu_custom_call.1} parent=5 // pred_fallthru
        _
      %p159 = scmp.lt.s32.totalorder %s16, 2
      // Predicated region
      $region13: #{tpu_custom_call.1} parent=5 // pred_check
        %p160 = pneg %p159
      $region14: #{tpu_custom_call.1} parent=5 // pred_check_branch
        %162 = sbr.rel (%p160) target = $region16
      $region15: #{tpu_custom_call.1} parent=5 // pred_region
        // Predicated region
        $region17: #{tpu_custom_call.1} parent=15 // pred_check
          %p163 = pneg %p54
        $region18: #{tpu_custom_call.1} parent=15 // pred_check_branch
          %165 = sbr.rel (%p163) target = $region20
        $region19: #{tpu_custom_call.1} parent=15 // pred_region
          %s166 = sand.u32 %s44, 1
          %s167 = scalar_lea.sflag [#allocation3], %s166
          %s168 = sand.u32 %s44, 1
          %s169 = smul.addr %s168, 16
          %s170 = scalar_lea.vmem [#allocation2], %s169
          %s171 = sadd.s32 %s23, %s24
          %p172 = scmp.lt.s32.totalorder %s171, 0
          %s173 = scalar_select %p172, %s171, 0
          %s174 = smul.u32 2, %s173
          %s176 = ssub.s32 256, 256
          %177 = vsyncadd %s167, %s176
          %s178 = smul.addr %s174, 128
          %s179 = scalar_lea.hbm %s0, %s178
          %s181 = sshll.u32 %s170, 4
          %s182 = int_to_ptr.vmem [resolvable:$true] %s181
          %184 = dma.hbm_to_vmem [thread:$0]  %s179, 256, %s182, %s167
        $region20: #{tpu_custom_call.1} parent=15 // pred_fallthru
          _
        // Predicated region
        $region21: #{tpu_custom_call.1} parent=15 // pred_check
          %p185 = pneg %p86
        $region22: #{tpu_custom_call.1} parent=15 // pred_check_branch
          %187 = sbr.rel (%p185) target = $region24
        $region23: #{tpu_custom_call.1} parent=15 // pred_region
          %s188 = sand.u32 %s76, 1
          %s189 = scalar_lea.sflag [#allocation5], %s188
          %s190 = sand.u32 %s76, 1
          %s191 = smul.addr %s190, 16
          %s192 = scalar_lea.vmem [#allocation4], %s191
          %s193 = sadd.s32 %s23, %s24
          %p194 = scmp.lt.s32.totalorder %s193, 0
          %s195 = scalar_select %p194, %s193, 0
          %s196 = smul.u32 2, %s195
          %s198 = ssub.s32 256, 256
          %199 = vsyncadd %s189, %s198
          %s200 = smul.addr %s196, 128
          %s201 = scalar_lea.hbm %s1, %s200
          %s203 = sshll.u32 %s192, 4
          %s204 = int_to_ptr.vmem [resolvable:$true] %s203
          %206 = dma.hbm_to_vmem [thread:$0]  %s201, 256, %s204, %s189
        $region24: #{tpu_custom_call.1} parent=15 // pred_fallthru
          _
      $region16: #{tpu_custom_call.1} parent=5 // pred_fallthru
        _
      %p207 = scmp.le.s32.totalorder 1, %s16
      %p208 = scmp.lt.s32.totalorder %s16, 3
      %p209 = pnand %p207, %p208
      %p210 = pneg %p209
      // Predicated region
      $region25: #{tpu_custom_call.1} parent=5 // pred_check
        _
      $region26: #{tpu_custom_call.1} parent=5 // pred_check_branch
        %212 = sbr.rel (%p209) target = $region28
      $region27: #{tpu_custom_call.1} parent=5 // pred_region
        %s213 = ssub.s32 %s16, 1
        %s214 = sand.u32 %s47, 1
        %s215 = scalar_lea.sflag [#allocation3], %s214
        %s216 = sand.u32 %s47, 1
        %s217 = smul.addr %s216, 16
        %s218 = scalar_lea.vmem [#allocation2], %s217
        // Predicated region
        $region29: #{tpu_custom_call.1} parent=27 // pred_check
          %p219 = pneg %p60
        $region30: #{tpu_custom_call.1} parent=27 // pred_check_branch
          %221 = sbr.rel (%p219) target = $region32
        $region31: #{tpu_custom_call.1} parent=27 // pred_region
          %222 = dma.done %s215, 256
        $region32: #{tpu_custom_call.1} parent=27 // pred_fallthru
          _
        %s223 = sand.u32 %s79, 1
        %s224 = scalar_lea.sflag [#allocation5], %s223
        %s225 = sand.u32 %s79, 1
        %s226 = smul.addr %s225, 16
        %s227 = scalar_lea.vmem [#allocation4], %s226
        // Predicated region
        $region33: #{tpu_custom_call.1} parent=27 // pred_check
          %p228 = pneg %p92
        $region34: #{tpu_custom_call.1} parent=27 // pred_check_branch
          %230 = sbr.rel (%p228) target = $region36
        $region35: #{tpu_custom_call.1} parent=27 // pred_region
          %231 = dma.done %s224, 256
        $region36: #{tpu_custom_call.1} parent=27 // pred_fallthru
          _
        %s232 = sand.u32 %s47, 1
        %s233 = scalar_lea.sflag [#allocation3], %s232
        %s234 = sand.u32 %s47, 1
        %s235 = smul.addr %s234, 16
        %s236 = scalar_lea.vmem [#allocation2], %s235
        %p237 = pneg %p60
        %p238 = pneg %p57
        %s239 = sand.u32 %s79, 1
        %s240 = scalar_lea.sflag [#allocation5], %s239
        %s241 = sand.u32 %s79, 1
        %s242 = smul.addr %s241, 16
        %s243 = scalar_lea.vmem [#allocation4], %s242
        %p244 = pneg %p92
        %p245 = pneg %p89
        %p246 = pneg %p118
        %p247 = pneg %p115
        %p248 = scmp.lt.s32.totalorder %s25, 1
        %s249 = scalar_select %p248, %s25, 1
        %s250 = smul.addr %s249, 8
        %s251 = scalar_lea.vmem %s2, %s250
        %p252 = pneg %p144
        %p253 = pneg %p141
        %p254 = scmp.lt.s32.totalorder %s25, 1
        %s255 = scalar_select %p254, %s25, 1
        %s256 = smul.addr %s255, 8
        %s257 = scalar_lea.vmem %s3, %s256
        %s258 = sadd.s32 %s25, %s26
        %p259 = scmp.lt.s32.totalorder %s258, 0
        %s260 = scalar_select %p259, %s258, 0
        %s261 = smul.u32 2, %s260
        %s262 = sadd.s32 %s25, %s26
        %p263 = scmp.lt.s32.totalorder %s262, 0
        %s264 = scalar_select %p263, %s262, 0
        %s265 = smul.u32 2, %s264
        %p266 = scmp.lt.s32.totalorder %s25, 1
        %s267 = scalar_select %p266, %s25, 1
        %s268 = smul.addr %s267, 8
        %s269 = scalar_lea.vmem %s2, %s268
        %p270 = scmp.lt.s32.totalorder %s25, 1
        %s271 = scalar_select %p270, %s25, 1
        %s272 = smul.addr %s271, 8
        %s273 = scalar_lea.vmem %s3, %s272
        %p274 = scmp.eq.s32.totalorder %s26, 0
        // Predicated region
        $region37: #{tpu_custom_call.1} parent=27 // pred_check
          %p275 = pneg %p274
        $region38: #{tpu_custom_call.1} parent=27 // pred_check_branch
          %277 = sbr.rel (%p275) target = $region40
        $region39: #{tpu_custom_call.1} parent=27 // pred_region
          %278 = vst [vmem:[%s269] sm:$0x3f] 0.0
          %279 = vst [vmem:[%s273] sm:$0x3f] 0.0
        $region40: #{tpu_custom_call.1} parent=27 // pred_fallthru
          _
        %s280 = sadd.s32 %s25, %s26
        %s281 = smul.u32 %s280, 256
        %s282 = ssub.s32 256, %s281
        %v283 = vlaneseq
        %v284 = vand.u32 %v283, 127
        %v285 = vld [vmem:[%s269] sm:$0x3f]
        %v286 = vld [vmem:[%s273] sm:$0x3f]
        %v287 = vstv 0
        %v288 = vadd.s32 %v284, %v287
        %v289 = vstv %s282
        %vm290 = vcmp.lt.s32.totalorder %v288, %v289
        %v291 = vld [vmem:[%s218] sm:$0x3f]
        %v292 = vsel %vm290, 1, 0
        %vm293 = vcmp.eq.s32.totalorder %v292, 1
        %v294 = vsel %vm293, %v291, 0.0
        %v295 = vld [vmem:[%s227] sm:$0x3f]
        %v296 = vsel %vm293, %v295, 0.0
        %v297 = vadd.f32 %v285, %v294
        %v298 = vadd.f32 %v286, %v296
        %v299 = vstv 128
        %v300 = vadd.s32 %v284, %v299
        %vm301 = vcmp.lt.s32.totalorder %v300, %v289
        %s302 = scalar_lea.vmem %s218, 8 [#allocation2]
        %v303 = vld [vmem:[%s302] sm:$0x3f]
        %v304 = vsel %vm301, 1, 0
        %vm305 = vcmp.eq.s32.totalorder %v304, 1
        %v306 = vsel %vm305, %v303, 0.0
        %s307 = scalar_lea.vmem %s227, 8 [#allocation4]
        %v308 = vld [vmem:[%s307] sm:$0x3f]
        %v309 = vsel %vm305, %v308, 0.0
        %v310 = vadd.f32 %v297, %v306
        %v311 = vadd.f32 %v298, %v309
        %312 = vst [vmem:[%s269] sm:$0x3f] %v310
        %313 = vst [vmem:[%s273] sm:$0x3f] %v311
        %p314 = scmp.lt.s32.totalorder %s25, 1
        %s315 = scalar_select %p314, %s25, 1
        %s316 = smul.addr %s315, 8
        %s317 = scalar_lea.vmem %s2, %s316
        %p318 = scmp.lt.s32.totalorder %s25, 1
        %s319 = scalar_select %p318, %s25, 1
        %s320 = smul.addr %s319, 8
        %s321 = scalar_lea.vmem %s3, %s320
        // Predicated region
        $region41: #{tpu_custom_call.1} parent=27 // pred_check
          %p322 = pneg %p115
        $region42: #{tpu_custom_call.1} parent=27 // pred_check_branch
          %324 = sbr.rel (%p322) target = $region44
        $region43: #{tpu_custom_call.1} parent=27 // pred_region
          _
        $region44: #{tpu_custom_call.1} parent=27 // pred_fallthru
          _
        // Predicated region
        $region45: #{tpu_custom_call.1} parent=27 // pred_check
          %p325 = pneg %p141
        $region46: #{tpu_custom_call.1} parent=27 // pred_check_branch
          %327 = sbr.rel (%p325) target = $region48
        $region47: #{tpu_custom_call.1} parent=27 // pred_region
          _
        $region48: #{tpu_custom_call.1} parent=27 // pred_fallthru
          _
      $region28: #{tpu_custom_call.1} parent=5 // pred_fallthru
        _
      %p328 = scmp.le.s32.totalorder 2, %s16
      // Predicated region
      $region49: #{tpu_custom_call.1} parent=5 // pred_check
        %p329 = pneg %p328
      $region50: #{tpu_custom_call.1} parent=5 // pred_check_branch
        %331 = sbr.rel (%p329) target = $region52
      $region51: #{tpu_custom_call.1} parent=5 // pred_region
        %s332 = ssub.s32 %s16, 2
        // Predicated region
        $region53: #{tpu_custom_call.1} parent=51 // pred_check
          %p333 = pneg %p121
        $region54: #{tpu_custom_call.1} parent=51 // pred_check_branch
          %335 = sbr.rel (%p333) target = $region56
        $region55: #{tpu_custom_call.1} parent=51 // pred_region
          %p336 = scmp.lt.s32.totalorder %s27, 1
          %s337 = scalar_select %p336, %s27, 1
          %s338 = smul.addr %s337, 8
          %s339 = scalar_lea.vmem %s2, %s338
        $region56: #{tpu_custom_call.1} parent=51 // pred_fallthru
          _
        // Predicated region
        $region57: #{tpu_custom_call.1} parent=51 // pred_check
          %p340 = pneg %p147
        $region58: #{tpu_custom_call.1} parent=51 // pred_check_branch
          %342 = sbr.rel (%p340) target = $region60
        $region59: #{tpu_custom_call.1} parent=51 // pred_region
          %p343 = scmp.lt.s32.totalorder %s27, 1
          %s344 = scalar_select %p343, %s27, 1
          %s345 = smul.addr %s344, 8
          %s346 = scalar_lea.vmem %s3, %s345
        $region60: #{tpu_custom_call.1} parent=51 // pred_fallthru
          _
      $region52: #{tpu_custom_call.1} parent=5 // pred_fallthru
        _
    $region6: #{tpu_custom_call.1} parent=1 // loop_footer
      %s20 = sadd.s32 1, %s16
    $region7: #{tpu_custom_call.1} parent=1 // loop_footer_branch
      %15 = sbr.rel target = $region3
    $region8: #{tpu_custom_call.1} parent=1 // loop_exit
      _
    %347 = vsyncpa [#allocation3], 1
    %s348 = scalar_lea.sflag [#allocation3], 1
    %349 = vsyncpa %s348, 1
    %350 = vsyncpa [#allocation5], 1
    %s351 = scalar_lea.sflag [#allocation5], 1
    %352 = vsyncpa %s351, 1

</llo_original>
